<compile_context>
chip_gen: v6e
topology: v6e:2x2x1
jax: 0.10.0
libtpu: 0.0.40
codegen_flags: <defaults>
</compile_context>

<pallas_src>
import functools
import math

import jax
import jax.numpy as jnp
from jax.experimental import pallas as pl
from jax.experimental.pallas import tpu as pltpu

_LANES = 128


def _gelu(x, approximate):
    if approximate:
        # tanh approximation: transcendental runs on the otherwise-idle EUP slot.
        # Differs from nn.GELU() (exact erf) at the ~1e-3 level.
        c = math.sqrt(2.0 / math.pi)
        return 0.5 * x * (1.0 + jnp.tanh(c * (x + 0.044715 * x * x * x)))
    # nn.GELU() default = exact erf-based GELU.
    return 0.5 * x * (1.0 + jax.lax.erf(x * (1.0 / math.sqrt(2.0))))


def _vad_encoder_kernel(x_ref, w_ref, p_ref, out_ref, xpad_ref, lhs_ref, pk_ref,
                        *, approximate_gelu):
    # One (batch element b, time tile ti) grid step.
    #   x_ref   : (1, T, C) f32       full-T input block (resident across time tiles)
    #   w_ref   : (K*C, C)  cdt       im2col conv weight (tap-major, block-diag per group)
    #   p_ref   : (8, C)    f32       packed params: row0=bias, row1=gamma, row2=beta
    #   out_ref : (1, tile_t//r_pack, 128) lane-dense output tile  (or (1, tile_t, C) if C==128)
    #   xpad_ref: (T+K, C)  cdt       halo-padded, pre-cast copy of x (persists per b)
    #   lhs_ref : (tile_t, K*C) cdt   im2col LHS for this tile
    #   pk_ref  : (tile_t, C) f32     LayerNorm-output staging for the lane-dense pack
    ti = pl.program_id(1)
    T = x_ref.shape[1]
    C = x_ref.shape[2]
    tile_t = lhs_ref.shape[0]
    K = w_ref.shape[0] // C
    pad = K // 2
    r_pack = _LANES // C                 # timesteps packed per 128-lane output row
    cdt = xpad_ref.dtype                 # matmul compute dtype (f32, or bf16)

    # ---- per-batch-element init: cast x ONCE, zero ONLY the K halo rows ------------------
    @pl.when(ti == 0)
    def _init():
        xpad_ref[0:pad, :] = jnp.zeros((pad, C), cdt)
        xpad_ref[pad:pad + T, :] = x_ref[0].astype(cdt)
        xpad_ref[pad + T:, :] = jnp.zeros((K - pad, C), cdt)

    t0 = ti * tile_t                     # first timestep of this tile

    # ---- im2col LHS, built as full-lane (tile_t, 128) slabs of r_pack taps each ----------
    # lhs[r, k*C + ci] = x[t0 + r + k - pad, ci]   (zero outside [0, T) via the halo rows)
    for s0 in range(0, K, r_pack):
        n = min(r_pack, K - s0)
        taps = [xpad_ref[pl.ds(t0 + s0 + j, tile_t), :] for j in range(n)]
        slab = taps[0] if n == 1 else jnp.concatenate(taps, axis=-1)
        lhs_ref[:, s0 * C:(s0 + n) * C] = slab      # 128-lane aligned, unmasked store

    # ---- grouped Conv1d (+ SamePad crop) == one (tile_t, K*C) @ (K*C, C) MXU matmul ------
    conv = jnp.dot(lhs_ref[...], w_ref[...], preferred_element_type=jnp.float32)
    conv = conv + p_ref[0:1, :]                     # conv bias, added once after the matmul
    x_conv = _gelu(conv, approximate_gelu)

    # ---- residual add (f32 x straight from the resident input block) + LayerNorm over C --
    y = x_ref[0, pl.ds(t0, tile_t), :].astype(jnp.float32) + x_conv
    mean = jnp.mean(y, axis=-1, keepdims=True)
    var = jnp.mean(jnp.square(y - mean), axis=-1, keepdims=True)
    yn = (y - mean) * jax.lax.rsqrt(var + 1e-5)
    yn = yn * p_ref[1:2, :] + p_ref[2:3, :]

    # ---- lane-dense store -----------------------------------------------------------------
    if r_pack == 1:
        out_ref[0] = yn.astype(out_ref.dtype)
    else:
        # Pack r_pack consecutive timesteps per 128-lane row, row-major:
        #   out[r, dt*C:(dt+1)*C] = yn[r_pack*r + dt]
        # so the HBM writeback is full-lane and the wrapper reshape back to (B, T, C)
        # is a free contiguous reshape.  A tile-sized f32 staging ref feeds the strided
        # interleave; the final store is ONE unmasked 128-lane store.
        # TODO(synk): replace with a value-level (tile_t, C)->(rows, 128) reshape once
        # Mosaic supports it, removing this small VMEM bounce entirely.
        rows = out_ref.shape[1]
        pk_ref[...] = yn
        parts = [pk_ref[pl.ds(dt, rows, stride=r_pack), :] for dt in range(r_pack)]
        out_ref[0] = jnp.concatenate(parts, axis=-1).astype(out_ref.dtype)


def vad_encoder(x, w_conv, b_conv, gamma, beta, *, groups, tile_t=None,
                matmul_dtype=jnp.float32, approximate_gelu=False):
    """VAD_Encoder forward (eval mode) as a single fused Pallas kernel.

    x      : (B, T, C) float32, channels-last.
    w_conv : (C, C//groups, K)  PyTorch Conv1d weight layout.
    b_conv, gamma, beta : (C,)
    tile_t : timesteps per grid step (None = auto; capped for v7x's smaller VMEM).
    matmul_dtype : jnp.float32 (bit-faithful) or jnp.bfloat16.  The MXU is bf16-native on
             v5e, v6e and v7x (f32 accumulation), so bf16 halves im2col/weight bytes on all
             of them; only the conv itself rounds -- validate vs tolerance.
    approximate_gelu : use the tanh GELU (EUP) instead of exact erf (~1e-3 deviation).
    """
    B, T, C = x.shape
    C_out, Cg, K = w_conv.shape
    # The block-diagonal grouped-conv expansion below is only valid when C_out == C_in.
    assert C_out == C, "grouped-conv block-diagonal expansion requires C_out == C_in"
    assert Cg * groups == C
    assert K % 2 == 0, "even conv_pos assumed (SamePad crops one output sample)"
    # TODO(synk): odd conv_pos (no SamePad crop) not implemented.
    assert _LANES % C == 0, "small-C path: C must divide 128"
    # TODO(synk): for real wav2vec2 widths (C >= 128, groups=16) switch to per-group
    # (tile_t, K*Cg)@(K*Cg, Cg) matmuls; the block-diagonal RHS here would be mostly zeros.

    r_pack = _LANES // C
    itemsize = jnp.dtype(matmul_dtype).itemsize

    if tile_t is None:
        # Cap the im2col scratch (~tile_t*K*C*itemsize) well under the v7x scoped-VMEM
        # default (32 MiB inside 64 MiB physical); v5e/v6e have more headroom.
        cap = max(8 * r_pack, (4 << 20) // (K * C * itemsize))
        tile_t = T
        if T > cap:
            step = 8 * r_pack
            for cand in range((cap // step) * step, 0, -step):
                if T % cand == 0:
                    tile_t = cand
                    break
    assert T % tile_t == 0, "tile_t must divide T"
    assert tile_t % r_pack == 0
    rows = tile_t // r_pack
    assert rows % 8 == 0 or tile_t == T, "output tile rows must be a multiple of 8"

    # im2col RHS (K*C, C): w2[k*C + ci, co] = W[co, ci_local, k], block-diagonal per group.
    Wk = jnp.zeros((K, C, C), jnp.float32)
    for g in range(groups):
        blk = jnp.transpose(w_conv[g * Cg:(g + 1) * Cg], (2, 1, 0))  # (K, Cg_in, Cg_out)
        Wk = Wk.at[:, g * Cg:(g + 1) * Cg, g * Cg:(g + 1) * Cg].set(blk)
    w2 = Wk.reshape(K * C, C).astype(matmul_dtype)

    # bias / gamma / beta packed into one sublane-padded (8, C) slab (one small operand).
    params = jnp.zeros((8, C), jnp.float32)
    params = params.at[0].set(b_conv).at[1].set(gamma).at[2].set(beta)

    if r_pack == 1:
        out_block = (1, tile_t, C)
        out_shape = jax.ShapeDtypeStruct((B, T, C), x.dtype)
    else:
        out_block = (1, rows, _LANES)
        out_shape = jax.ShapeDtypeStruct((B, T // r_pack, _LANES), x.dtype)

    kernel = functools.partial(_vad_encoder_kernel, approximate_gelu=approximate_gelu)

    out = pl.pallas_call(
        kernel,
        out_shape=out_shape,
        grid_spec=pltpu.PrefetchScalarGridSpec(
            num_scalar_prefetch=0,
            # grid = (batch, time tiles).  Batch is "parallel" (v7x megacore); the time
            # axis is "arbitrary" because xpad_ref is filled at ti == 0 and reused by the
            # later tiles of the same batch element.
            grid=(B, T // tile_t),
            in_specs=[
                # Full-T input block: its index_map ignores ti, so it is DMA'd once per
                # batch element and stays resident while that element's time tiles run.
                pl.BlockSpec((1, T, C), lambda b, t: (b, 0, 0)),
                # w2 / params are grid-invariant.  (pl.Buffered(1) would drop their
                # pointless double-buffering; negligible at this C, so left default.)
                pl.BlockSpec((K * C, C), lambda b, t: (0, 0)),
                pl.BlockSpec((8, C), lambda b, t: (0, 0)),
            ],
            out_specs=pl.BlockSpec(out_block, lambda b, t: (b, t, 0)),
            scratch_shapes=[
                pltpu.VMEM((T + K, C), matmul_dtype),       # halo-padded, pre-cast x
                pltpu.VMEM((tile_t, K * C), matmul_dtype),  # im2col LHS (one tile)
                pltpu.VMEM((tile_t, C), jnp.float32),       # LN-output staging (one tile)
            ],
        ),
        compiler_params=pltpu.CompilerParams(
            dimension_semantics=("parallel", "arbitrary")),
    )(x, w2, params)

    return out.reshape(B, T, C)   # contiguous row-major reshape back to (B, T, C); free


def vad_encoder_reference(x, w_conv, b_conv, gamma, beta, *, groups):
    """Plain-JAX reference mirroring the PyTorch forward (eval mode)."""
    K = w_conv.shape[2]
    pad = K // 2
    xt = jnp.transpose(x, (0, 2, 1))  # (B, C, T)  -- PyTorch NCT
    conv = jax.lax.conv_general_dilated(
        xt, w_conv, window_strides=(1,), padding=[(pad, pad)],
        feature_group_count=groups, dimension_numbers=("NCH", "OIH", "NCH"))
    conv = conv + b_conv[None, :, None]
    conv = conv[:, :, :-1]                       # SamePad (even kernel)
    conv = jax.nn.gelu(conv, approximate=False)  # nn.GELU()
    y = x + jnp.transpose(conv, (0, 2, 1))
    mean = y.mean(-1, keepdims=True)
    var = jnp.square(y - mean).mean(-1, keepdims=True)
    return (y - mean) / jnp.sqrt(var + 1e-5) * gamma + beta


if __name__ == "__main__":
    # Small, module-consistent shapes:
    #   encoder_embed_dim -> C = 32, conv_pos -> K = 8 (even, so SamePad crops),
    #   conv_pos_groups -> groups = 4, batch B = 2, seq T = 64 (exercises 2 time tiles).
    B, T, C = 2, 64, 32
    K, groups = 8, 4

    key = jax.random.PRNGKey(0)
    kx, kw = jax.random.split(key)
    x = jax.random.normal(kx, (B, T, C), dtype=jnp.float32)

    # Deterministic parameter init matching the module's __init__:
    #   pos_conv.weight ~ N(0, std), std = sqrt(4 / (conv_pos * embed_dim)),
    #   pos_conv.bias = 0 ; LayerNorm gamma = 1, beta = 0.
    #   weight_norm(dim=2) at init reproduces the original weight exactly.
    std = math.sqrt(4.0 / (K * C))
    v = std * jax.random.normal(kw, (C, C // groups, K), dtype=jnp.float32)
    g_wn = jnp.sqrt(jnp.sum(jnp.square(v), axis=(0, 1), keepdims=True))
    w_conv = g_wn * v / g_wn  # == v ; explicit weight-norm reparam for clarity
    b_conv = jnp.zeros((C,), jnp.float32)
    gamma = jnp.ones((C,), jnp.float32)
    beta = jnp.zeros((C,), jnp.float32)

    ref = vad_encoder_reference(x, w_conv, b_conv, gamma, beta, groups=groups)

    # f32 matmul path, time axis tiled onto the grid (2 tiles of 32 timesteps).
    out = vad_encoder(x, w_conv, b_conv, gamma, beta, groups=groups, tile_t=32)
    out = jax.block_until_ready(out)
    assert out.shape == (B, T, C)
    assert jnp.allclose(out, ref, atol=1e-4, rtol=1e-4), "f32 tiled kernel mismatch"

    # Single-tile path (auto tile_t == T).
    out1 = vad_encoder(x, w_conv, b_conv, gamma, beta, groups=groups)
    out1 = jax.block_until_ready(out1)
    assert jnp.allclose(out1, ref, atol=1e-4, rtol=1e-4), "f32 single-tile kernel mismatch"

    # bf16 MXU path (valid on v5e/v6e/v7x; f32 accumulation, only the conv rounds).
    outb = vad_encoder(x, w_conv, b_conv, gamma, beta, groups=groups,
                       tile_t=32, matmul_dtype=jnp.bfloat16)
    outb = jax.block_until_ready(outb)
    assert jnp.allclose(outb, ref, atol=5e-2, rtol=5e-2), "bf16 kernel mismatch"

    # NOTE: F.dropout(p=0.1, training=False) is identity in eval mode -> omitted.
    print("KERNEL_OK")
</pallas_src>

<mosaic_0001>
module attributes {stable_mosaic.version = 11 : i64} {
  func.func @_vad_encoder_kernel(%arg0: i32, %arg1: i32, %arg2: memref<1x64x32xf32, #tpu.memory_space<vmem>>, %arg3: memref<256x32xf32, #tpu.memory_space<vmem>>, %arg4: memref<8x32xf32, #tpu.memory_space<vmem>>, %arg5: memref<1x8x128xf32, #tpu.memory_space<vmem>>, %arg6: memref<72x32xf32, #tpu.memory_space<vmem>>, %arg7: memref<32x256xf32, #tpu.memory_space<vmem>>, %arg8: memref<32x32xf32, #tpu.memory_space<vmem>>) attributes {dimension_semantics = [#tpu.dimension_semantics<parallel>, #tpu.dimension_semantics<arbitrary>], iteration_bounds = array<i64: 2, 2>, scalar_prefetch = 0 : i64, scratch_operands = 3 : i64, tpu.core_type = #tpu.core_type<tc>, window_params = [{transform_indices = @transform_0, window_bounds = array<i64: 1, 64, 32>}, {pipeline_mode = #tpu.pipeline_mode<synchronous>, transform_indices = @transform_1, window_bounds = array<i64: 256, 32>}, {pipeline_mode = #tpu.pipeline_mode<synchronous>, transform_indices = @transform_2, window_bounds = array<i64: 8, 32>}, {transform_indices = @transform_3, window_bounds = array<i64: 1, 8, 128>}]} {
    %c0_i32 = arith.constant 0 : i32
    %0 = arith.cmpi eq, %arg1, %c0_i32 : i32
    %1 = arith.extui %0 : i1 to i32
    %c0_i32_0 = arith.constant 0 : i32
    %2 = arith.cmpi ne, %1, %c0_i32_0 : i32
    scf.if %2 {
      %cst_53 = arith.constant 0.000000e+00 : f32
      %91 = vector.broadcast %cst_53 : f32 to vector<4x32xf32>
      %c0_54 = arith.constant 0 : index
      %c0_55 = arith.constant 0 : index
      %92 = vector.load %arg6[%c0_54, %c0_55] : memref<72x32xf32, #tpu.memory_space<vmem>>, vector<4x32xf32>
      tpu.vector_store %arg6[%c0_54, %c0_55], %91 {strides = array<i32>} : memref<72x32xf32, #tpu.memory_space<vmem>>, vector<4x32xf32>,
      %c0_56 = arith.constant 0 : index
      %c0_57 = arith.constant 0 : index
      %c0_58 = arith.constant 0 : index
      %93 = vector.load %arg2[%c0_56, %c0_57, %c0_58] : memref<1x64x32xf32, #tpu.memory_space<vmem>>, vector<1x64x32xf32>
      %94 = vector.shape_cast %93 : vector<1x64x32xf32> to vector<64x32xf32>
      %c4 = arith.constant 4 : index
      %c0_59 = arith.constant 0 : index
      %95 = vector.load %arg6[%c4, %c0_59] : memref<72x32xf32, #tpu.memory_space<vmem>>, vector<64x32xf32>
      tpu.vector_store %arg6[%c4, %c0_59], %94 {strides = array<i32>} : memref<72x32xf32, #tpu.memory_space<vmem>>, vector<64x32xf32>,
      %cst_60 = arith.constant 0.000000e+00 : f32
      %96 = vector.broadcast %cst_60 : f32 to vector<4x32xf32>
      %c68 = arith.constant 68 : index
      %c0_61 = arith.constant 0 : index
      %97 = vector.load %arg6[%c68, %c0_61] : memref<72x32xf32, #tpu.memory_space<vmem>>, vector<4x32xf32>
      tpu.vector_store %arg6[%c68, %c0_61], %96 {strides = array<i32>} : memref<72x32xf32, #tpu.memory_space<vmem>>, vector<4x32xf32>,
    } else {
    }
    %c32_i32 = arith.constant 32 : i32
    %3 = arith.muli %arg1, %c32_i32 : i32
    %c0_i32_1 = arith.constant 0 : i32
    %4 = arith.addi %3, %c0_i32_1 : i32
    %c0_i32_2 = arith.constant 0 : i32
    %5 = arith.addi %4, %c0_i32_2 : i32
    %6 = arith.index_cast %5 : i32 to index
    %c0 = arith.constant 0 : index
    %7 = vector.load %arg6[%6, %c0] : memref<72x32xf32, #tpu.memory_space<vmem>>, vector<32x32xf32>
    %c0_i32_3 = arith.constant 0 : i32
    %8 = arith.addi %3, %c0_i32_3 : i32
    %c1_i32 = arith.constant 1 : i32
    %9 = arith.addi %8, %c1_i32 : i32
    %10 = arith.index_cast %9 : i32 to index
    %c0_4 = arith.constant 0 : index
    %11 = vector.load %arg6[%10, %c0_4] : memref<72x32xf32, #tpu.memory_space<vmem>>, vector<32x32xf32>
    %c0_i32_5 = arith.constant 0 : i32
    %12 = arith.addi %3, %c0_i32_5 : i32
    %c2_i32 = arith.constant 2 : i32
    %13 = arith.addi %12, %c2_i32 : i32
    %14 = arith.index_cast %13 : i32 to index
    %c0_6 = arith.constant 0 : index
    %15 = vector.load %arg6[%14, %c0_6] : memref<72x32xf32, #tpu.memory_space<vmem>>, vector<32x32xf32>
    %c0_i32_7 = arith.constant 0 : i32
    %16 = arith.addi %3, %c0_i32_7 : i32
    %c3_i32 = arith.constant 3 : i32
    %17 = arith.addi %16, %c3_i32 : i32
    %18 = arith.index_cast %17 : i32 to index
    %c0_8 = arith.constant 0 : index
    %19 = vector.load %arg6[%18, %c0_8] : memref<72x32xf32, #tpu.memory_space<vmem>>, vector<32x32xf32>
    %20 = tpu.concatenate %7, %11, %15, %19 in 1 : vector<32x32xf32>, vector<32x32xf32>, vector<32x32xf32>, vector<32x32xf32> -> vector<32x128xf32>
    %c0_9 = arith.constant 0 : index
    %c0_10 = arith.constant 0 : index
    %21 = vector.load %arg7[%c0_9, %c0_10] : memref<32x256xf32, #tpu.memory_space<vmem>>, vector<32x128xf32>
    tpu.vector_store %arg7[%c0_9, %c0_10], %20 {strides = array<i32>} : memref<32x256xf32, #tpu.memory_space<vmem>>, vector<32x128xf32>,
    %c4_i32 = arith.constant 4 : i32
    %22 = arith.addi %3, %c4_i32 : i32
    %c0_i32_11 = arith.constant 0 : i32
    %23 = arith.addi %22, %c0_i32_11 : i32
    %24 = arith.index_cast %23 : i32 to index
    %c0_12 = arith.constant 0 : index
    %25 = vector.load %arg6[%24, %c0_12] : memref<72x32xf32, #tpu.memory_space<vmem>>, vector<32x32xf32>
    %c4_i32_13 = arith.constant 4 : i32
    %26 = arith.addi %3, %c4_i32_13 : i32
    %c1_i32_14 = arith.constant 1 : i32
    %27 = arith.addi %26, %c1_i32_14 : i32
    %28 = arith.index_cast %27 : i32 to index
    %c0_15 = arith.constant 0 : index
    %29 = vector.load %arg6[%28, %c0_15] : memref<72x32xf32, #tpu.memory_space<vmem>>, vector<32x32xf32>
    %c4_i32_16 = arith.constant 4 : i32
    %30 = arith.addi %3, %c4_i32_16 : i32
    %c2_i32_17 = arith.constant 2 : i32
    %31 = arith.addi %30, %c2_i32_17 : i32
    %32 = arith.index_cast %31 : i32 to index
    %c0_18 = arith.constant 0 : index
    %33 = vector.load %arg6[%32, %c0_18] : memref<72x32xf32, #tpu.memory_space<vmem>>, vector<32x32xf32>
    %c4_i32_19 = arith.constant 4 : i32
    %34 = arith.addi %3, %c4_i32_19 : i32
    %c3_i32_20 = arith.constant 3 : i32
    %35 = arith.addi %34, %c3_i32_20 : i32
    %36 = arith.index_cast %35 : i32 to index
    %c0_21 = arith.constant 0 : index
    %37 = vector.load %arg6[%36, %c0_21] : memref<72x32xf32, #tpu.memory_space<vmem>>, vector<32x32xf32>
    %38 = tpu.concatenate %25, %29, %33, %37 in 1 : vector<32x32xf32>, vector<32x32xf32>, vector<32x32xf32>, vector<32x32xf32> -> vector<32x128xf32>
    %c0_22 = arith.constant 0 : index
    %c128 = arith.constant 128 : index
    %39 = vector.load %arg7[%c0_22, %c128] : memref<32x256xf32, #tpu.memory_space<vmem>>, vector<32x128xf32>
    tpu.vector_store %arg7[%c0_22, %c128], %38 {strides = array<i32>} : memref<32x256xf32, #tpu.memory_space<vmem>>, vector<32x128xf32>,
    %c0_23 = arith.constant 0 : index
    %c0_24 = arith.constant 0 : index
    %40 = vector.load %arg7[%c0_23, %c0_24] : memref<32x256xf32, #tpu.memory_space<vmem>>, vector<32x256xf32>
    %c0_25 = arith.constant 0 : index
    %c0_26 = arith.constant 0 : index
    %41 = vector.load %arg3[%c0_25, %c0_26] : memref<256x32xf32, #tpu.memory_space<vmem>>, vector<256x32xf32>
    %cst = arith.constant dense<0.000000e+00> : vector<32x32xf32>
    %42 = tpu.matmul %40, %41, %cst {dimension_numbers = #tpu.dot_dimension_numbers<[1], [0], [0], [1], [0, 0, 1, 1], [], []>} : vector<32x256xf32>, vector<256x32xf32>, vector<32x32xf32> -> vector<32x32xf32>
    %c0_27 = arith.constant 0 : index
    %c0_28 = arith.constant 0 : index
    %43 = vector.load %arg4[%c0_27, %c0_28] : memref<8x32xf32, #tpu.memory_space<vmem>>, vector<1x32xf32>
    %44 = vector.broadcast %43 : vector<1x32xf32> to vector<32x32xf32>
    %45 = arith.addf %42, %44 : vector<32x32xf32>
    %cst_29 = arith.constant 5.000000e-01 : f32
    %46 = vector.broadcast %cst_29 : f32 to vector<32x32xf32>
    %47 = arith.mulf %46, %45 : vector<32x32xf32>
    %cst_30 = arith.constant 0.707106769 : f32
    %48 = vector.broadcast %cst_30 : f32 to vector<32x32xf32>
    %49 = arith.mulf %45, %48 : vector<32x32xf32>
    %50 = math.erf %49 : vector<32x32xf32>
    %cst_31 = arith.constant 1.000000e+00 : f32
    %51 = vector.broadcast %cst_31 : f32 to vector<32x32xf32>
    %52 = arith.addf %51, %50 : vector<32x32xf32>
    %53 = arith.mulf %47, %52 : vector<32x32xf32>
    %c0_32 = arith.constant 0 : index
    %54 = arith.index_cast %3 : i32 to index
    %c0_33 = arith.constant 0 : index
    %55 = vector.load %arg2[%c0_32, %54, %c0_33] : memref<1x64x32xf32, #tpu.memory_space<vmem>>, vector<1x32x32xf32>
    %56 = vector.shape_cast %55 : vector<1x32x32xf32> to vector<32x32xf32>
    %57 = arith.addf %56, %53 : vector<32x32xf32>
    %cst_34 = arith.constant dense<0.000000e+00> : vector<32xf32>
    %58 = vector.multi_reduction <add>, %57, %cst_34 [1] : vector<32x32xf32> to vector<32xf32>
    %59 = vector.shape_cast %58 : vector<32xf32> to vector<32x1xf32>
    %cst_35 = arith.constant 3.200000e+01 : f32
    %60 = vector.broadcast %cst_35 : f32 to vector<32x1xf32>
    %61 = arith.divf %59, %60 : vector<32x1xf32>
    %62 = vector.broadcast %61 : vector<32x1xf32> to vector<32x32xf32>
    %63 = arith.subf %57, %62 : vector<32x32xf32>
    %64 = arith.mulf %63, %63 : vector<32x32xf32>
    %cst_36 = arith.constant dense<0.000000e+00> : vector<32xf32>
    %65 = vector.multi_reduction <add>, %64, %cst_36 [1] : vector<32x32xf32> to vector<32xf32>
    %66 = vector.shape_cast %65 : vector<32xf32> to vector<32x1xf32>
    %cst_37 = arith.constant 3.200000e+01 : f32
    %67 = vector.broadcast %cst_37 : f32 to vector<32x1xf32>
    %68 = arith.divf %66, %67 : vector<32x1xf32>
    %69 = vector.broadcast %61 : vector<32x1xf32> to vector<32x32xf32>
    %70 = arith.subf %57, %69 : vector<32x32xf32>
    %cst_38 = arith.constant 9.99999974E-6 : f32
    %71 = vector.broadcast %cst_38 : f32 to vector<32x1xf32>
    %72 = arith.addf %68, %71 : vector<32x1xf32>
    %73 = math.rsqrt %72 : vector<32x1xf32>
    %74 = vector.broadcast %73 : vector<32x1xf32> to vector<32x32xf32>
    %75 = arith.mulf %70, %74 : vector<32x32xf32>
    %c1 = arith.constant 1 : index
    %c0_39 = arith.constant 0 : index
    %76 = vector.load %arg4[%c1, %c0_39] : memref<8x32xf32, #tpu.memory_space<vmem>>, vector<1x32xf32>
    %77 = vector.broadcast %76 : vector<1x32xf32> to vector<32x32xf32>
    %78 = arith.mulf %75, %77 : vector<32x32xf32>
    %c2 = arith.constant 2 : index
    %c0_40 = arith.constant 0 : index
    %79 = vector.load %arg4[%c2, %c0_40] : memref<8x32xf32, #tpu.memory_space<vmem>>, vector<1x32xf32>
    %80 = vector.broadcast %79 : vector<1x32xf32> to vector<32x32xf32>
    %81 = arith.addf %78, %80 : vector<32x32xf32>
    %c0_41 = arith.constant 0 : index
    %c0_42 = arith.constant 0 : index
    %82 = vector.load %arg8[%c0_41, %c0_42] : memref<32x32xf32, #tpu.memory_space<vmem>>, vector<32x32xf32>
    tpu.vector_store %arg8[%c0_41, %c0_42], %81 {strides = array<i32>} : memref<32x32xf32, #tpu.memory_space<vmem>>, vector<32x32xf32>,
    %c0_43 = arith.constant 0 : index
    %c0_44 = arith.constant 0 : index
    %83 = tpu.strided_load %arg8[%c0_43, %c0_44] {strides = array<i32: 4, 1>} : memref<32x32xf32, #tpu.memory_space<vmem>>, vector<8x32xf32>
    %c1_45 = arith.constant 1 : index
    %c0_46 = arith.constant 0 : index
    %84 = tpu.strided_load %arg8[%c1_45, %c0_46] {strides = array<i32: 4, 1>} : memref<32x32xf32, #tpu.memory_space<vmem>>, vector<8x32xf32>
    %c2_47 = arith.constant 2 : index
    %c0_48 = arith.constant 0 : index
    %85 = tpu.strided_load %arg8[%c2_47, %c0_48] {strides = array<i32: 4, 1>} : memref<32x32xf32, #tpu.memory_space<vmem>>, vector<8x32xf32>
    %c3 = arith.constant 3 : index
    %c0_49 = arith.constant 0 : index
    %86 = tpu.strided_load %arg8[%c3, %c0_49] {strides = array<i32: 4, 1>} : memref<32x32xf32, #tpu.memory_space<vmem>>, vector<8x32xf32>
    %87 = tpu.concatenate %83, %84, %85, %86 in 1 : vector<8x32xf32>, vector<8x32xf32>, vector<8x32xf32>, vector<8x32xf32> -> vector<8x128xf32>
    %c0_50 = arith.constant 0 : index
    %c0_51 = arith.constant 0 : index
    %c0_52 = arith.constant 0 : index
    %88 = vector.load %arg5[%c0_50, %c0_51, %c0_52] : memref<1x8x128xf32, #tpu.memory_space<vmem>>, vector<1x8x128xf32>
    %89 = vector.shape_cast %88 : vector<1x8x128xf32> to vector<8x128xf32>
    %90 = vector.shape_cast %87 : vector<8x128xf32> to vector<1x8x128xf32>
    tpu.vector_store %arg5[%c0_50, %c0_51, %c0_52], %90 {strides = array<i32>} : memref<1x8x128xf32, #tpu.memory_space<vmem>>, vector<1x8x128xf32>,
    return
  }
  func.func @transform_0(%arg0: i32, %arg1: i32) -> (i32, i32, i32) {
    %c0_i32 = arith.constant 0 : i32
    %c0_i32_0 = arith.constant 0 : i32
    %c0_i32_1 = arith.constant 0 : i32
    return %arg0, %c0_i32, %c0_i32_0 : i32, i32, i32
  }
  func.func @transform_1(%arg0: i32, %arg1: i32) -> (i32, i32) {
    %c0_i32 = arith.constant 0 : i32
    %c0_i32_0 = arith.constant 0 : i32
    %c0_i32_1 = arith.constant 0 : i32
    return %c0_i32, %c0_i32_0 : i32, i32
  }
  func.func @transform_2(%arg0: i32, %arg1: i32) -> (i32, i32) {
    %c0_i32 = arith.constant 0 : i32
    %c0_i32_0 = arith.constant 0 : i32
    %c0_i32_1 = arith.constant 0 : i32
    return %c0_i32, %c0_i32_0 : i32, i32
  }
  func.func @transform_3(%arg0: i32, %arg1: i32) -> (i32, i32, i32) {
    %c0_i32 = arith.constant 0 : i32
    %c0_i32_0 = arith.constant 0 : i32
    return %arg0, %arg1, %c0_i32 : i32, i32, i32
  }
}

</mosaic_0001>

<llo_original>
// kernel: tpu_custom_call.1
$region0: #{tpu_custom_call.1}
  #allocation0 [shape = 'u32[]', space=smem, size = 0x4, offset = 0x4, fixed_abs, tag = 'smem constant byte address 0x4 - core index']
  #allocation1 [shape = 'u32[144,128]{1,0:T(1,128)}', space=vmem, size = 0x12000, scoped, tag = 'internal scratch']
  #allocation2 [shape = 'f32[72,32]{1,0:T(8,128)}', space=vmem, size = 0x9000, scoped, tag = 'scratch operand']
  #allocation3 [shape = 'f32[32,256]{1,0:T(8,128)}', space=vmem, size = 0x8000, scoped, tag = 'scratch operand']
  #allocation4 [shape = 'f32[32,32]{1,0:T(8,128)}', space=vmem, size = 0x4000, scoped, tag = 'scratch operand']
  %s0 = inlined_call_operand.vmem [shape: f32[2,64,32], index: 0, kind: input, shape index: {}]
  %s1 = inlined_call_operand.vmem [shape: f32[256,32], index: 1, kind: input, shape index: {}]
  %s2 = inlined_call_operand.vmem [shape: f32[8,32], index: 2, kind: input, shape index: {}]
  %s3 = inlined_call_operand.hbm [shape: f32[2,16,128], index: 3, kind: output, shape index: {}]
  %s4 = sld [smem:[#allocation0]]
  $region49: #{tpu_custom_call.1} parent=0
    _
  %s6 = ssub.s32 1, %s4
  %s7 = scalar_select 0, %s6, %s4
  $region1: #{tpu_custom_call.1} parent=0
    #allocation5 [shape = 'u8[8192]{0}', space=vmem, size = 0x2000, scoped, tag = 'output window, operand 0']
    #allocation6 [shape = 's32[2]{0}', space=sflag, size = 0x8, scoped, tag = 'scoped memory for tpu_custom_call.1']
    %8 = vsyncpa [#allocation6], 0
    %s9 = scalar_lea.sflag [#allocation6], 1
    %10 = vsyncpa %s9, 0
    loop: start=0, step=1, limit=6
    $region2: #{tpu_custom_call.1} parent=1 // loop_pre_header
      _
    $region3: #{tpu_custom_call.1} parent=1 // loop_header
      %s12 = sphi 0, %s16
      %p13 = scmp.ge.s32.totalorder %s12, 6
      %s19 = sphi 0, %s31
      %s20 = sphi 0, %s27
      %s21 = sphi 0, %s19
      %s22 = sphi 0, %s20
      %s23 = sphi 0, %s21
      %s24 = sphi 0, %s22
      %s34 = sphi 0, %s36
      %s37 = sphi 0, %s34
      %s38 = sphi 0, %s37
      %s54 = sphi 0, %s38
      %s58 = sphi 0, %s58
      %s60 = sphi 0, %s58
      %s61 = sphi 0, %s60
      %s75 = sphi 0, %s61
      %s79 = sphi 0, %s79
      %s81 = sphi 0, %s79
      %s82 = sphi 0, %s81
      %s96 = sphi 0, %s82
      %s104 = sphi 0, %s106
      %s107 = sphi 0, %s104
      %s108 = sphi 0, %s107
      %s124 = sphi 0, %s108
    $region4: #{tpu_custom_call.1} parent=1 // loop_header_branch
      %15 = sbr.rel (%p13) target = $region8
    $region5: #{tpu_custom_call.1} parent=1 // loop_body
      %s17 = ssub.s32 %s12, 1
      %s18 = ssub.s32 %s12, 2
      %s25 = sadd.s32 1, %s20
      %p26 = scmp.ge.s32.totalorder %s25, 2
      %s27 = scalar_select %p26, 0, %s25
      %s28 = sadd.s32 1, %s19
      %s29 = scalar_select %p26, %s28, %s19
      %p30 = scmp.ge.s32.totalorder %s29, 2
      %s31 = scalar_select %p30, 0, %s29
      %s32 = ssub.s32 %s19, %s31
      %p33 = scmp.eq.s32.totalorder %s32, 0
      %s35 = sadd.s32 %s34, 1
      %s36 = scalar_select %p33, %s34, %s35
      %p39 = pneg %p33
      %p40 = scmp.eq.s32.totalorder %s12, 3
      %p41 = por %p39, %p40
      %p42 = scmp.ne.s32.totalorder %s34, %s37
      %p43 = scmp.eq.s32.totalorder %s12, 0
      %p44 = por %p42, %p43
      %p45 = scmp.ne.s32.totalorder %s34, %s37
      %p46 = scmp.eq.s32.totalorder %s17, 3
      %p47 = por %p45, %p46
      %p48 = scmp.ne.s32.totalorder %s37, %s38
      %p49 = scmp.eq.s32.totalorder %s17, 0
      %p50 = por %p48, %p49
      %p51 = scmp.ne.s32.totalorder %s37, %s38
      %p52 = scmp.eq.s32.totalorder %s18, 3
      %p53 = por %p51, %p52
      %p55 = scmp.ne.s32.totalorder %s38, %s54
      %p56 = scmp.eq.s32.totalorder %s18, 0
      %p57 = por %p55, %p56
      %s59 = sadd.s32 %s58, 1
      %p62 = scmp.eq.s32.totalorder %s12, 3
      %p63 = scmp.ne.s32.totalorder %s58, %s60
      %p64 = scmp.eq.s32.totalorder %s12, 0
      %p65 = por %p63, %p64
      %p66 = scmp.ne.s32.totalorder %s58, %s60
      %p67 = scmp.eq.s32.totalorder %s17, 3
      %p68 = por %p66, %p67
      %p69 = scmp.ne.s32.totalorder %s60, %s61
      %p70 = scmp.eq.s32.totalorder %s17, 0
      %p71 = por %p69, %p70
      %p72 = scmp.ne.s32.totalorder %s60, %s61
      %p73 = scmp.eq.s32.totalorder %s18, 3
      %p74 = por %p72, %p73
      %p76 = scmp.ne.s32.totalorder %s61, %s75
      %p77 = scmp.eq.s32.totalorder %s18, 0
      %p78 = por %p76, %p77
      %s80 = sadd.s32 %s79, 1
      %p83 = scmp.eq.s32.totalorder %s12, 3
      %p84 = scmp.ne.s32.totalorder %s79, %s81
      %p85 = scmp.eq.s32.totalorder %s12, 0
      %p86 = por %p84, %p85
      %p87 = scmp.ne.s32.totalorder %s79, %s81
      %p88 = scmp.eq.s32.totalorder %s17, 3
      %p89 = por %p87, %p88
      %p90 = scmp.ne.s32.totalorder %s81, %s82
      %p91 = scmp.eq.s32.totalorder %s17, 0
      %p92 = por %p90, %p91
      %p93 = scmp.ne.s32.totalorder %s81, %s82
      %p94 = scmp.eq.s32.totalorder %s18, 3
      %p95 = por %p93, %p94
      %p97 = scmp.ne.s32.totalorder %s82, %s96
      %p98 = scmp.eq.s32.totalorder %s18, 0
      %p99 = por %p97, %p98
      %s100 = ssub.s32 %s19, %s31
      %s101 = ssub.s32 %s20, %s27
      %s102 = sor.u32 %s100, %s101
      %p103 = scmp.eq.s32.totalorder %s102, 0
      %s105 = sadd.s32 %s104, 1
      %s106 = scalar_select %p103, %s104, %s105
      %p109 = pneg %p103
      %p110 = scmp.eq.s32.totalorder %s12, 3
      %p111 = por %p109, %p110
      %p112 = scmp.ne.s32.totalorder %s104, %s107
      %p113 = scmp.eq.s32.totalorder %s12, 0
      %p114 = por %p112, %p113
      %p115 = scmp.ne.s32.totalorder %s104, %s107
      %p116 = scmp.eq.s32.totalorder %s17, 3
      %p117 = por %p115, %p116
      %p118 = scmp.ne.s32.totalorder %s107, %s108
      %p119 = scmp.eq.s32.totalorder %s17, 0
      %p120 = por %p118, %p119
      %p121 = scmp.ne.s32.totalorder %s107, %s108
      %p122 = scmp.eq.s32.totalorder %s18, 3
      %p123 = por %p121, %p122
      %p125 = scmp.ne.s32.totalorder %s108, %s124
      %p126 = scmp.eq.s32.totalorder %s18, 0
      %p127 = por %p125, %p126
      %p128 = scmp.le.s32.totalorder 1, %s12
      %p129 = scmp.lt.s32.totalorder %s12, 5
      %p130 = pnand %p128, %p129
      %p131 = pneg %p130
      // Predicated region
      $region9: #{tpu_custom_call.1} parent=5 // pred_check
        _
      $region10: #{tpu_custom_call.1} parent=5 // pred_check_branch
        %133 = sbr.rel (%p130) target = $region12
      $region11: #{tpu_custom_call.1} parent=5 // pred_region
        %s134 = ssub.s32 %s12, 1
        // Predicated region
        $region13: #{tpu_custom_call.1} parent=11 // pred_check
          %p135 = pneg %p71
        $region14: #{tpu_custom_call.1} parent=11 // pred_check_branch
          %137 = sbr.rel (%p135) target = $region16
        $region15: #{tpu_custom_call.1} parent=11 // pred_region
          _
        $region16: #{tpu_custom_call.1} parent=11 // pred_fallthru
          _
        // Predicated region
        $region17: #{tpu_custom_call.1} parent=11 // pred_check
          %p138 = pneg %p92
        $region18: #{tpu_custom_call.1} parent=11 // pred_check_branch
          %140 = sbr.rel (%p138) target = $region20
        $region19: #{tpu_custom_call.1} parent=11 // pred_region
          _
        $region20: #{tpu_custom_call.1} parent=11 // pred_fallthru
          _
      $region12: #{tpu_custom_call.1} parent=5 // pred_fallthru
        _
      %p141 = scmp.lt.s32.totalorder %s12, 4
      // Predicated region
      $region21: #{tpu_custom_call.1} parent=5 // pred_check
        %p142 = pneg %p141
      $region22: #{tpu_custom_call.1} parent=5 // pred_check_branch
        %144 = sbr.rel (%p142) target = $region24
      $region23: #{tpu_custom_call.1} parent=5 // pred_region
        // Predicated region
        $region25: #{tpu_custom_call.1} parent=23 // pred_check
          %p145 = pneg %p44
        $region26: #{tpu_custom_call.1} parent=23 // pred_check_branch
          %147 = sbr.rel (%p145) target = $region28
        $region27: #{tpu_custom_call.1} parent=23 // pred_region
          %p148 = scmp.lt.s32.totalorder %s19, 1
          %s149 = scalar_select %p148, %s19, 1
          %s150 = smul.addr %s149, 8
          %s151 = smul.addr %s150, 8
          %s152 = scalar_lea.vmem %s0, %s151
        $region28: #{tpu_custom_call.1} parent=23 // pred_fallthru
          _
      $region24: #{tpu_custom_call.1} parent=5 // pred_fallthru
        _
      %p153 = scmp.le.s32.totalorder 1, %s12
      %p154 = scmp.lt.s32.totalorder %s12, 5
      %p155 = pnand %p153, %p154
      %p156 = pneg %p155
      // Predicated region
      $region29: #{tpu_custom_call.1} parent=5 // pred_check
        _
      $region30: #{tpu_custom_call.1} parent=5 // pred_check_branch
        %158 = sbr.rel (%p155) target = $region32
      $region31: #{tpu_custom_call.1} parent=5 // pred_region
        %s159 = ssub.s32 %s12, 1
        %p160 = scmp.lt.s32.totalorder %s21, 1
        %s161 = scalar_select %p160, %s21, 1
        %s162 = smul.addr %s161, 8
        %s163 = smul.addr %s162, 8
        %s164 = scalar_lea.vmem %s0, %s163
        %p165 = pneg %p50
        %p166 = pneg %p47
        %p167 = pneg %p71
        %p168 = pneg %p68
        %p169 = pneg %p92
        %p170 = pneg %p89
        %p171 = pneg %p120
        %p172 = pneg %p117
        %s173 = sand.u32 %s107, 1
        %s174 = scalar_lea.sflag [#allocation6], %s173
        %s175 = sand.u32 %s107, 1
        %s176 = smul.addr %s175, 8
        %s177 = scalar_lea.vmem [#allocation5], %s176
        %p178 = scmp.lt.s32.totalorder %s21, 1
        %s179 = scalar_select %p178, %s21, 1
        %s180 = smul.addr %s179, 8
        %s181 = smul.addr %s180, 8
        %s182 = scalar_lea.vmem %s0, %s181
        %p183 = scmp.eq.s32.totalorder %s22, 0
        // Predicated region
        $region33: #{tpu_custom_call.1} parent=31 // pred_check
          %p184 = pneg %p183
        $region34: #{tpu_custom_call.1} parent=31 // pred_check_branch
          %186 = sbr.rel (%p184) target = $region36
        $region35: #{tpu_custom_call.1} parent=31 // pred_region
          %vm187 = vcmask 257024
          %188 = vst.msk [vmem:[#allocation2] sm:$0xf] %vm187, 0.0
          %v189 = vld [vmem:[%s182] sm:$0xff]
          %v190 = vld [vmem:[%s182 + $0x8] sm:$0xff]
          %v191 = vld [vmem:[%s182 + $0x10] sm:$0xff]
          %v192 = vld [vmem:[%s182 + $0x18] sm:$0xff]
          %v193 = vld [vmem:[%s182 + $0x20] sm:$0xff]
          %v194 = vld [vmem:[%s182 + $0x28] sm:$0xff]
          %v195 = vld [vmem:[%s182 + $0x30] sm:$0xff]
          %v196 = vld [vmem:[%s182 + $0x38] sm:$0xff]
          %vm197 = vcmask 261120
          %198 = vst.msk [vmem:[#allocation2 + $0x4] sm:$0xff] %vm197, %v189
          %199 = vst.msk [vmem:[#allocation2 + $0xc] sm:$0xff] %vm197, %v190
          %200 = vst.msk [vmem:[#allocation2 + $0x14] sm:$0xff] %vm197, %v191
          %201 = vst.msk [vmem:[#allocation2 + $0x1c] sm:$0xff] %vm197, %v192
          %202 = vst.msk [vmem:[#allocation2 + $0x24] sm:$0xff] %vm197, %v193
          %203 = vst.msk [vmem:[#allocation2 + $0x2c] sm:$0xff] %vm197, %v194
          %204 = vst.msk [vmem:[#allocation2 + $0x34] sm:$0xff] %vm197, %v195
          %205 = vst.msk [vmem:[#allocation2 + $0x3c] sm:$0xff] %vm197, %v196
          %206 = vst.msk [vmem:[#allocation2 + $0x44] sm:$0xf] %vm187, 0.0
        $region36: #{tpu_custom_call.1} parent=31 // pred_fallthru
          _
        %s207 = smul.u32 %s22, 32
        %s208 = scalar_lea.vmem [#allocation2], %s207
        %v209 = vld [vmem:[%s208] sm:$0xff]
        %v210 = vld [vmem:[%s208 + $0x8] sm:$0xff]
        %v211 = vld [vmem:[%s208 + $0x10] sm:$0xff]
        %v212 = vld [vmem:[%s208 + $0x18] sm:$0xff]
        %s213 = sadd.s32 %s207, 1
        %s214 = scalar_lea.vmem [#allocation2], %s213
        %v215 = vld [vmem:[%s214] sm:$0xff]
        %v216 = vld [vmem:[%s214 + $0x8] sm:$0xff]
        %v217 = vld [vmem:[%s214 + $0x10] sm:$0xff]
        %v218 = vld [vmem:[%s214 + $0x18] sm:$0xff]
        %s219 = sadd.s32 %s207, 2
        %s220 = scalar_lea.vmem [#allocation2], %s219
        %v221 = vld [vmem:[%s220] sm:$0xff]
        %v222 = vld [vmem:[%s220 + $0x8] sm:$0xff]
        %v223 = vld [vmem:[%s220 + $0x10] sm:$0xff]
        %v224 = vld [vmem:[%s220 + $0x18] sm:$0xff]
        %s225 = sadd.s32 %s207, 3
        %s226 = scalar_lea.vmem [#allocation2], %s225
        %v227 = vld [vmem:[%s226] sm:$0xff]
        %v228 = vld [vmem:[%s226 + $0x8] sm:$0xff]
        %v229 = vld [vmem:[%s226 + $0x10] sm:$0xff]
        %v230 = vld [vmem:[%s226 + $0x18] sm:$0xff]
        %235 = vrot.lane.b32.xlu0 %v215, 32
        %v236 = vpop.permute.xlu0 %235
        %237 = vrot.lane.b32.xlu0 %v216, 32
        %v238 = vpop.permute.xlu0 %237
        %239 = vrot.lane.b32.xlu0 %v217, 32
        %v240 = vpop.permute.xlu0 %239
        %241 = vrot.lane.b32.xlu0 %v218, 32
        %v242 = vpop.permute.xlu0 %241
        %251 = vrot.lane.b32.xlu0 %v221, 64
        %v252 = vpop.permute.xlu0 %251
        %253 = vrot.lane.b32.xlu0 %v222, 64
        %v254 = vpop.permute.xlu0 %253
        %255 = vrot.lane.b32.xlu0 %v223, 64
        %v256 = vpop.permute.xlu0 %255
        %257 = vrot.lane.b32.xlu0 %v224, 64
        %v258 = vpop.permute.xlu0 %257
        %267 = vrot.lane.b32.xlu0 %v227, 96
        %v268 = vpop.permute.xlu0 %267
        %269 = vrot.lane.b32.xlu0 %v228, 96
        %v270 = vpop.permute.xlu0 %269
        %271 = vrot.lane.b32.xlu0 %v229, 96
        %v272 = vpop.permute.xlu0 %271
        %273 = vrot.lane.b32.xlu0 %v230, 96
        %v274 = vpop.permute.xlu0 %273
        %vm279 = vcmask 261120
        %v280 = vsel %vm279, %v209, %v236
        %v281 = vsel %vm279, %v210, %v238
        %v282 = vsel %vm279, %v211, %v240
        %v283 = vsel %vm279, %v212, %v242
        %vm284 = vcmask 523264
        %v285 = vsel %vm284, %v280, %v252
        %v286 = vsel %vm284, %v281, %v254
        %v287 = vsel %vm284, %v282, %v256
        %v288 = vsel %vm284, %v283, %v258
        %vm289 = vcmask 785408
        %v290 = vsel %vm289, %v285, %v268
        %v291 = vsel %vm289, %v286, %v270
        %v292 = vsel %vm289, %v287, %v272
        %v293 = vsel %vm289, %v288, %v274
        %294 = vst [vmem:[#allocation3] sm:$0xff] %v290
        %295 = vst [vmem:[#allocation3 + $0x10] sm:$0xff] %v291
        %296 = vst [vmem:[#allocation3 + $0x20] sm:$0xff] %v292
        %297 = vst [vmem:[#allocation3 + $0x30] sm:$0xff] %v293
        %s298 = sadd.s32 %s207, 4
        %s299 = scalar_lea.vmem [#allocation2], %s298
        %v300 = vld [vmem:[%s299] sm:$0xff]
        %v301 = vld [vmem:[%s299 + $0x8] sm:$0xff]
        %v302 = vld [vmem:[%s299 + $0x10] sm:$0xff]
        %v303 = vld [vmem:[%s299 + $0x18] sm:$0xff]
        %s304 = sadd.s32 %s207, 5
        %s305 = scalar_lea.vmem [#allocation2], %s304
        %v306 = vld [vmem:[%s305] sm:$0xff]
        %v307 = vld [vmem:[%s305 + $0x8] sm:$0xff]
        %v308 = vld [vmem:[%s305 + $0x10] sm:$0xff]
        %v309 = vld [vmem:[%s305 + $0x18] sm:$0xff]
        %s310 = sadd.s32 %s207, 6
        %s311 = scalar_lea.vmem [#allocation2], %s310
        %v312 = vld [vmem:[%s311] sm:$0xff]
        %v313 = vld [vmem:[%s311 + $0x8] sm:$0xff]
        %v314 = vld [vmem:[%s311 + $0x10] sm:$0xff]
        %v315 = vld [vmem:[%s311 + $0x18] sm:$0xff]
        %s316 = sadd.s32 %s207, 7
        %s317 = scalar_lea.vmem [#allocation2], %s316
        %v318 = vld [vmem:[%s317] sm:$0xff]
        %v319 = vld [vmem:[%s317 + $0x8] sm:$0xff]
        %v320 = vld [vmem:[%s317 + $0x10] sm:$0xff]
        %v321 = vld [vmem:[%s317 + $0x18] sm:$0xff]
        %326 = vrot.lane.b32.xlu0 %v306, 32
        %v327 = vpop.permute.xlu0 %326
        %328 = vrot.lane.b32.xlu0 %v307, 32
        %v329 = vpop.permute.xlu0 %328
        %330 = vrot.lane.b32.xlu0 %v308, 32
        %v331 = vpop.permute.xlu0 %330
        %332 = vrot.lane.b32.xlu0 %v309, 32
        %v333 = vpop.permute.xlu0 %332
        %342 = vrot.lane.b32.xlu0 %v312, 64
        %v343 = vpop.permute.xlu0 %342
        %344 = vrot.lane.b32.xlu0 %v313, 64
        %v345 = vpop.permute.xlu0 %344
        %346 = vrot.lane.b32.xlu0 %v314, 64
        %v347 = vpop.permute.xlu0 %346
        %348 = vrot.lane.b32.xlu0 %v315, 64
        %v349 = vpop.permute.xlu0 %348
        %358 = vrot.lane.b32.xlu0 %v318, 96
        %v359 = vpop.permute.xlu0 %358
        %360 = vrot.lane.b32.xlu0 %v319, 96
        %v361 = vpop.permute.xlu0 %360
        %362 = vrot.lane.b32.xlu0 %v320, 96
        %v363 = vpop.permute.xlu0 %362
        %364 = vrot.lane.b32.xlu0 %v321, 96
        %v365 = vpop.permute.xlu0 %364
        %v370 = vsel %vm279, %v300, %v327
        %v371 = vsel %vm279, %v301, %v329
        %v372 = vsel %vm279, %v302, %v331
        %v373 = vsel %vm279, %v303, %v333
        %v374 = vsel %vm284, %v370, %v343
        %v375 = vsel %vm284, %v371, %v345
        %v376 = vsel %vm284, %v372, %v347
        %v377 = vsel %vm284, %v373, %v349
        %v378 = vsel %vm289, %v374, %v359
        %v379 = vsel %vm289, %v375, %v361
        %v380 = vsel %vm289, %v376, %v363
        %v381 = vsel %vm289, %v377, %v365
        %382 = vst [vmem:[#allocation3 + $0x8] sm:$0xff] %v378
        %383 = vst [vmem:[#allocation3 + $0x18] sm:$0xff] %v379
        %384 = vst [vmem:[#allocation3 + $0x28] sm:$0xff] %v380
        %385 = vst [vmem:[#allocation3 + $0x38] sm:$0xff] %v381
        %v386 = vld [vmem:[#allocation3] sm:$0xff]
        %v387 = vld [vmem:[#allocation3 + $0x8] sm:$0xff]
        %v388 = vld [vmem:[#allocation3 + $0x10] sm:$0xff]
        %v389 = vld [vmem:[#allocation3 + $0x18] sm:$0xff]
        %v390 = vld [vmem:[#allocation3 + $0x20] sm:$0xff]
        %v391 = vld [vmem:[#allocation3 + $0x28] sm:$0xff]
        %v392 = vld [vmem:[#allocation3 + $0x30] sm:$0xff]
        %v393 = vld [vmem:[#allocation3 + $0x38] sm:$0xff]
        %v394 = vld [vmem:[%s1] sm:$0xff]
        %v395 = vld [vmem:[%s1 + $0x8] sm:$0xff]
        %v396 = vld [vmem:[%s1 + $0x10] sm:$0xff]
        %v397 = vld [vmem:[%s1 + $0x18] sm:$0xff]
        %v398 = vld [vmem:[%s1 + $0x20] sm:$0xff]
        %v399 = vld [vmem:[%s1 + $0x28] sm:$0xff]
        %v400 = vld [vmem:[%s1 + $0x30] sm:$0xff]
        %v401 = vld [vmem:[%s1 + $0x38] sm:$0xff]
        %v402 = vld [vmem:[%s1 + $0x40] sm:$0xff]
        %v403 = vld [vmem:[%s1 + $0x48] sm:$0xff]
        %v404 = vld [vmem:[%s1 + $0x50] sm:$0xff]
        %v405 = vld [vmem:[%s1 + $0x58] sm:$0xff]
        %v406 = vld [vmem:[%s1 + $0x60] sm:$0xff]
        %v407 = vld [vmem:[%s1 + $0x68] sm:$0xff]
        %v408 = vld [vmem:[%s1 + $0x70] sm:$0xff]
        %v409 = vld [vmem:[%s1 + $0x78] sm:$0xff]
        %v410 = vld [vmem:[%s1 + $0x80] sm:$0xff]
        %v411 = vld [vmem:[%s1 + $0x88] sm:$0xff]
        %v412 = vld [vmem:[%s1 + $0x90] sm:$0xff]
        %v413 = vld [vmem:[%s1 + $0x98] sm:$0xff]
        %v414 = vld [vmem:[%s1 + $0xa0] sm:$0xff]
        %v415 = vld [vmem:[%s1 + $0xa8] sm:$0xff]
        %v416 = vld [vmem:[%s1 + $0xb0] sm:$0xff]
        %v417 = vld [vmem:[%s1 + $0xb8] sm:$0xff]
        %v418 = vld [vmem:[%s1 + $0xc0] sm:$0xff]
        %v419 = vld [vmem:[%s1 + $0xc8] sm:$0xff]
        %v420 = vld [vmem:[%s1 + $0xd0] sm:$0xff]
        %v421 = vld [vmem:[%s1 + $0xd8] sm:$0xff]
        %v422 = vld [vmem:[%s1 + $0xe0] sm:$0xff]
        %v423 = vld [vmem:[%s1 + $0xe8] sm:$0xff]
        %v424 = vld [vmem:[%s1 + $0xf0] sm:$0xff]
        %v425 = vld [vmem:[%s1 + $0xf8] sm:$0xff]
        %v426 = vld [vmem:[%s2] sm:$0x1]
        %v427 = vlaneseq
        %v428 = vshrl.u32 %v427, 7
        %v429 = vsub.s32 0, %v428
        %v430 = vrot.slane %v426, %v429
        %431 = vmatprep.subr.mxu0 0.0
        %432 = vmatpush1.msra.mxu0 %v409
        %433 = vmatprep.subr.mxu0 0.0
        %434 = vmatpush1.msra.mxu0 %v408
        %435 = vmatprep.subr.mxu0 0.0
        %436 = vmatpush1.msra.mxu0 %v407
        %437 = vmatprep.subr.mxu0 0.0
        %438 = vmatpush1.msra.mxu0 %v406
        %439 = vmatprep.subr.mxu0 0.0
        %440 = vmatpush1.msra.mxu0 %v405
        %441 = vmatprep.subr.mxu0 0.0
        %442 = vmatpush1.msra.mxu0 %v404
        %443 = vmatprep.subr.mxu0 0.0
        %444 = vmatpush1.msra.mxu0 %v403
        %445 = vmatprep.subr.mxu0 0.0
        %446 = vmatpush1.msra.mxu0 %v402
        %447 = vmatprep.subr.mxu0 0.0
        %448 = vmatpush1.msra.mxu0 %v401
        %449 = vmatprep.subr.mxu0 0.0
        %450 = vmatpush1.msra.mxu0 %v400
        %451 = vmatprep.subr.mxu0 0.0
        %452 = vmatpush1.msra.mxu0 %v399
        %453 = vmatprep.subr.mxu0 0.0
        %454 = vmatpush1.msra.mxu0 %v398
        %455 = vmatprep.subr.mxu0 0.0
        %456 = vmatpush1.msra.mxu0 %v397
        %457 = vmatprep.subr.mxu0 0.0
        %458 = vmatpush1.msra.mxu0 %v396
        %459 = vmatprep.subr.mxu0 0.0
        %460 = vmatpush1.msra.mxu0 %v395
        %461 = vmatprep.subr.mxu0 0.0
        %462 = vmatpush1.msra.mxu0 %v394
        %463 = vmatprep.subr.mxu0 0.0
        %464 = vmatpush2.msra.mxu0 %v425
        %465 = vmatprep.subr.mxu0 0.0
        %466 = vmatpush2.msra.mxu0 %v424
        %467 = vmatprep.subr.mxu0 0.0
        %468 = vmatpush2.msra.mxu0 %v423
        %469 = vmatprep.subr.mxu0 0.0
        %470 = vmatpush2.msra.mxu0 %v422
        %471 = vmatprep.subr.mxu0 0.0
        %472 = vmatpush2.msra.mxu0 %v421
        %473 = vmatprep.subr.mxu0 0.0
        %474 = vmatpush2.msra.mxu0 %v420
        %475 = vmatprep.subr.mxu0 0.0
        %476 = vmatpush2.msra.mxu0 %v419
        %477 = vmatprep.subr.mxu0 0.0
        %478 = vmatpush2.msra.mxu0 %v418
        %479 = vmatprep.subr.mxu0 0.0
        %480 = vmatpush2.msra.mxu0 %v417
        %481 = vmatprep.subr.mxu0 0.0
        %482 = vmatpush2.msra.mxu0 %v416
        %483 = vmatprep.subr.mxu0 0.0
        %484 = vmatpush2.msra.mxu0 %v415
        %485 = vmatprep.subr.mxu0 0.0
        %486 = vmatpush2.msra.mxu0 %v414
        %487 = vmatprep.subr.mxu0 0.0
        %488 = vmatpush2.msra.mxu0 %v413
        %489 = vmatprep.subr.mxu0 0.0
        %490 = vmatpush2.msra.mxu0 %v412
        %491 = vmatprep.subr.mxu0 0.0
        %492 = vmatpush2.msra.mxu0 %v411
        %493 = vmatprep.subr.mxu0 0.0
        %494 = vmatpush2.msra.mxu0 %v410
        %495 = vmatprep.mubr.f32.mxu0 %v387
        %496 = vmatmul.mubr.f32.gmra.mxu0 %v386
        %v497 = vpop.f32.mrf.mxu0
        %v498 = vadd.f32 %v430, %v497
        %v499 = vpop.f32.mrf.mxu0
        %500 = vmatprep.mubr.f32.mxu0 %v389
        %501 = vmatmul.mubr.f32.gmra.mxu0 %v388
        %v502 = vpop.f32.mrf.mxu0
        %v503 = vadd.f32 %v430, %v502
        %v504 = vpop.f32.mrf.mxu0
        %505 = vmatprep.mubr.f32.mxu0 %v391
        %506 = vmatmul.mubr.f32.gmra.mxu0 %v390
        %v507 = vpop.f32.mrf.mxu0
        %v508 = vadd.f32 %v430, %v507
        %v509 = vpop.f32.mrf.mxu0
        %510 = vmatprep.mubr.f32.mxu0 %v393
        %511 = vmatmul.mubr.f32.gmra.mxu0 %v392
        %v512 = vpop.f32.mrf.mxu0
        %v513 = vadd.f32 %v430, %v512
        %v514 = vpop.f32.mrf.mxu0
        %515 = vdwg.mxu0
        %v516 = vmul.f32 %v498, 0.5
        %v517 = vmul.f32 %v503, 0.5
        %v518 = vmul.f32 %v508, 0.5
        %v519 = vmul.f32 %v513, 0.5
        %v520 = vmul.f32 %v498, 0.70710677
        %v521 = vmul.f32 %v503, 0.70710677
        %v522 = vmul.f32 %v508, 0.70710677
        %v523 = vmul.f32 %v513, 0.70710677
        %v524 = verf.f32.pop %v520
        %v525 = verf.f32.pop %v521
        %v526 = verf.f32.pop %v522
        %v527 = verf.f32.pop %v523
        %v528 = vadd.f32 %v524, 1.0
        %v529 = vadd.f32 %v525, 1.0
        %v530 = vadd.f32 %v526, 1.0
        %v531 = vadd.f32 %v527, 1.0
        %v532 = vmul.f32 %v516, %v528
        %v533 = vmul.f32 %v517, %v529
        %v534 = vmul.f32 %v518, %v530
        %v535 = vmul.f32 %v519, %v531
        %s536 = scalar_lea.vmem %s182, %s207
        %v537 = vld [vmem:[%s536] sm:$0xff]
        %v538 = vld [vmem:[%s536 + $0x8] sm:$0xff]
        %v539 = vld [vmem:[%s536 + $0x10] sm:$0xff]
        %v540 = vld [vmem:[%s536 + $0x18] sm:$0xff]
        %v541 = vadd.f32 %v537, %v532
        %v542 = vadd.f32 %v538, %v533
        %v543 = vadd.f32 %v539, %v534
        %v544 = vadd.f32 %v540, %v535
        %v545 = vsel %vm279, %v541, 0.0
        %546 = vadd.xlane.f32.xlu0 %v545
        %v547 = vpop.xlane.xlu0 %546
        %v548 = vsel %vm279, %v542, 0.0
        %549 = vadd.xlane.f32.xlu0 %v548
        %v550 = vpop.xlane.xlu0 %549
        %v551 = vsel %vm279, %v543, 0.0
        %552 = vadd.xlane.f32.xlu0 %v551
        %v553 = vpop.xlane.xlu0 %552
        %v554 = vsel %vm279, %v544, 0.0
        %555 = vadd.xlane.f32.xlu0 %v554
        %v556 = vpop.xlane.xlu0 %555
        %v557 = vrcp.pop 32.0
        %v558 = vmul.f32 %v547, %v557
        %v559 = vmul.f32 %v550, %v557
        %v560 = vmul.f32 %v553, %v557
        %v561 = vmul.f32 %v556, %v557
        %v562 = vsub.f32 %v541, %v558
        %v563 = vsub.f32 %v542, %v559
        %v564 = vsub.f32 %v543, %v560
        %v565 = vsub.f32 %v544, %v561
        %v566 = vmul.f32 %v562, %v562
        %v567 = vmul.f32 %v563, %v563
        %v568 = vmul.f32 %v564, %v564
        %v569 = vmul.f32 %v565, %v565
        %v570 = vsel %vm279, %v566, 0.0
        %571 = vadd.xlane.f32.xlu0 %v570
        %v572 = vpop.xlane.xlu0 %571
        %v573 = vsel %vm279, %v567, 0.0
        %574 = vadd.xlane.f32.xlu0 %v573
        %v575 = vpop.xlane.xlu0 %574
        %v576 = vsel %vm279, %v568, 0.0
        %577 = vadd.xlane.f32.xlu0 %v576
        %v578 = vpop.xlane.xlu0 %577
        %v579 = vsel %vm279, %v569, 0.0
        %580 = vadd.xlane.f32.xlu0 %v579
        %v581 = vpop.xlane.xlu0 %580
        %v582 = vmul.f32 %v572, %v557
        %v583 = vmul.f32 %v575, %v557
        %v584 = vmul.f32 %v578, %v557
        %v585 = vmul.f32 %v581, %v557
        %v586 = vadd.f32 %v582, 1e-05
        %v587 = vadd.f32 %v583, 1e-05
        %v588 = vadd.f32 %v584, 1e-05
        %v589 = vadd.f32 %v585, 1e-05
        %v590 = vrsqrt.pop %v586
        %v591 = vrsqrt.pop %v587
        %v592 = vrsqrt.pop %v588
        %v593 = vrsqrt.pop %v589
        %v594 = vmul.f32 %v562, %v590
        %v595 = vmul.f32 %v563, %v591
        %v596 = vmul.f32 %v564, %v592
        %v597 = vmul.f32 %v565, %v593
        %v598 = vld [vmem:[%s2 + $0x1] sm:$0x1]
        %v599 = vlaneseq
        %v600 = vshrl.u32 %v599, 7
        %v601 = vsub.s32 0, %v600
        %v602 = vrot.slane %v598, %v601
        %v603 = vmul.f32 %v594, %v602
        %v604 = vmul.f32 %v595, %v602
        %v605 = vmul.f32 %v596, %v602
        %v606 = vmul.f32 %v597, %v602
        %v607 = vld [vmem:[%s2 + $0x2] sm:$0x1]
        %v608 = vlaneseq
        %v609 = vshrl.u32 %v608, 7
        %v610 = vsub.s32 0, %v609
        %v611 = vrot.slane %v607, %v610
        %v612 = vadd.f32 %v603, %v611
        %v613 = vadd.f32 %v604, %v611
        %v614 = vadd.f32 %v605, %v611
        %v615 = vadd.f32 %v606, %v611
        %616 = vst.msk [vmem:[#allocation4] sm:$0xff] %vm279, %v612
        %617 = vst.msk [vmem:[#allocation4 + $0x8] sm:$0xff] %vm279, %v613
        %618 = vst.msk [vmem:[#allocation4 + $0x10] sm:$0xff] %vm279, %v614
        %619 = vst.msk [vmem:[#allocation4 + $0x18] sm:$0xff] %vm279, %v615
        %v620 = vld [vmem:[#allocation4] ss:$4 sm:$0xff]
        %s621 = scalar_lea.vmem [#allocation4], 1
        %v622 = vld [vmem:[%s621] ss:$4 sm:$0xff]
        %s623 = scalar_lea.vmem [#allocation4], 2
        %v624 = vld [vmem:[%s623] ss:$4 sm:$0xff]
        %s625 = scalar_lea.vmem [#allocation4], 3
        %v626 = vld [vmem:[%s625] ss:$4 sm:$0xff]
        %628 = vrot.lane.b32.xlu0 %v622, 32
        %v629 = vpop.permute.xlu0 %628
        %632 = vrot.lane.b32.xlu0 %v624, 64
        %v633 = vpop.permute.xlu0 %632
        %636 = vrot.lane.b32.xlu0 %v626, 96
        %v637 = vpop.permute.xlu0 %636
        %v639 = vsel %vm279, %v620, %v629
        %v640 = vsel %vm284, %v639, %v633
        %v641 = vsel %vm289, %v640, %v637
        %642 = vst [vmem:[%s177] sm:$0xff] %v641
        %s643 = sand.u32 %s107, 1
        %s644 = scalar_lea.sflag [#allocation6], %s643
        %s645 = sand.u32 %s107, 1
        %s646 = smul.addr %s645, 8
        %s647 = scalar_lea.vmem [#allocation5], %s646
        // Predicated region
        $region37: #{tpu_custom_call.1} parent=31 // pred_check
          %p648 = pneg %p117
        $region38: #{tpu_custom_call.1} parent=31 // pred_check_branch
          %650 = sbr.rel (%p648) target = $region40
        $region39: #{tpu_custom_call.1} parent=31 // pred_region
          %s652 = ssub.s32 128, 128
          %653 = vsyncadd %s644, %s652
          %s654 = smul.addr %s21, 2
          %s655 = sadd.s32 %s22, %s654
          %s656 = smul.addr %s655, 128
          %s657 = scalar_lea.hbm %s3, %s656
          %s659 = sshll.u32 %s647, 4
          %s660 = int_to_ptr.vmem [resolvable:$true] %s659
          %662 = dma.vmem_to_hbm [thread:$0]  %s660, 128, %s657, %s644
        $region40: #{tpu_custom_call.1} parent=31 // pred_fallthru
          _
      $region32: #{tpu_custom_call.1} parent=5 // pred_fallthru
        _
      %p663 = scmp.le.s32.totalorder 2, %s12
      // Predicated region
      $region41: #{tpu_custom_call.1} parent=5 // pred_check
        %p664 = pneg %p663
      $region42: #{tpu_custom_call.1} parent=5 // pred_check_branch
        %666 = sbr.rel (%p664) target = $region44
      $region43: #{tpu_custom_call.1} parent=5 // pred_region
        %s667 = ssub.s32 %s12, 2
        // Predicated region
        $region45: #{tpu_custom_call.1} parent=43 // pred_check
          %p668 = pneg %p123
        $region46: #{tpu_custom_call.1} parent=43 // pred_check_branch
          %670 = sbr.rel (%p668) target = $region48
        $region47: #{tpu_custom_call.1} parent=43 // pred_region
          %s671 = sand.u32 %s108, 1
          %s672 = scalar_lea.sflag [#allocation6], %s671
          %s673 = sand.u32 %s108, 1
          %s674 = smul.addr %s673, 8
          %s675 = scalar_lea.vmem [#allocation5], %s674
          %676 = dma.done %s672, 128
        $region48: #{tpu_custom_call.1} parent=43 // pred_fallthru
          _
      $region44: #{tpu_custom_call.1} parent=5 // pred_fallthru
        _
    $region6: #{tpu_custom_call.1} parent=1 // loop_footer
      %s16 = sadd.s32 1, %s12
    $region7: #{tpu_custom_call.1} parent=1 // loop_footer_branch
      %11 = sbr.rel target = $region3
    $region8: #{tpu_custom_call.1} parent=1 // loop_exit
      _
    %677 = vsyncpa [#allocation6], 1
    %s678 = scalar_lea.sflag [#allocation6], 1
    %679 = vsyncpa %s678, 1

</llo_original>
